<compile_context>
chip_gen: v5e
topology: v5e:2x2
jax: 0.10.0
libtpu: 0.0.40
codegen_flags: <defaults>
</compile_context>

<pallas_src>
import functools

import jax
import jax.numpy as jnp
from jax.experimental import pallas as pl
from jax.experimental.pallas import tpu as pltpu


def _round_up(x, m):
    return ((x + m - 1) // m) * m


def _twinq_kernel(xs_ref, xa_ref,
                  w1s_ref, w1a_ref, b1_ref,
                  w2a_ref, b2a_ref, w2b_ref, b2b_ref,
                  w3t_ref, w3b_ref, b3_ref,
                  q_ref):
    f32 = jnp.float32
    bf16 = jnp.bfloat16

    # Fused layer 1 for both twins (N = 2H), concat-free: x = [states | actions].
    h1 = (jnp.dot(xs_ref[...], w1s_ref[...], preferred_element_type=f32)
          + jnp.dot(xa_ref[...], w1a_ref[...], preferred_element_type=f32)
          + b1_ref[...])
    h1 = jnp.maximum(h1, 0.0).astype(bf16)

    h = w2a_ref.shape[0]                    # hidden width of each twin (static)
    h1a = h1[:, :h]                         # Q1 branch
    h1b = h1[:, h:]                         # Q2 branch

    # Layer 2, per twin (kept separate: block-diag here would double FLOPs/bytes).
    h2a = jnp.maximum(
        jnp.dot(h1a, w2a_ref[...], preferred_element_type=f32) + b2a_ref[...],
        0.0).astype(bf16)
    h2b = jnp.maximum(
        jnp.dot(h1b, w2b_ref[...], preferred_element_type=f32) + b2b_ref[...],
        0.0).astype(bf16)

    # Fused block-diagonal head: one (TILE_M, 2) output, col 0 = Q1, col 1 = Q2.
    # w3t has [w3_Q1 | 0], w3b has [0 | w3_Q2], so summing the two partial
    # matmuls is exactly the block-diagonal (2H, 2) product.
    q = (jnp.dot(h2a, w3t_ref[...], preferred_element_type=f32)
         + jnp.dot(h2b, w3b_ref[...], preferred_element_type=f32)
         + b3_ref[...])
    q_ref[...] = q
    # TODO(synk): on v5e a fully lane-dense (TILE_M, 128)-padded output slab would
    # further reduce masked-store overhead; (TILE_M, 2) is already 2x better than
    # two (M, 1) outputs and is negligible on v6e/v7x.


def _pack_params(params, num_inputs, num_actions):
    """Fuse / pad / bf16-cast the two per-twin MLPs into the kernel layout."""
    q1_w1, q1_b1, q1_w2, q1_b2, q1_w3, q1_b3 = params["Q1"]
    q2_w1, q2_b1, q2_w2, q2_b2, q2_w3, q2_b3 = params["Q2"]

    ni_p = _round_up(num_inputs, 16)
    na_p = _round_up(num_actions, 16)

    def pad_rows(w, rows):
        return jnp.pad(w, ((0, rows - w.shape[0]), (0, 0)))

    # Layer 1: split (D, H) into state/action parts, fuse twins along N (-> 2H).
    w1s = jnp.concatenate([q1_w1[:num_inputs], q2_w1[:num_inputs]], axis=1)
    w1a = jnp.concatenate([q1_w1[num_inputs:], q2_w1[num_inputs:]], axis=1)
    w1s = pad_rows(w1s, ni_p).astype(jnp.bfloat16)
    w1a = pad_rows(w1a, na_p).astype(jnp.bfloat16)
    b1 = jnp.concatenate([q1_b1, q2_b1], axis=1).astype(jnp.float32)

    # Layer 3: block-diagonal head (H, 2) halves.
    w3_top = jnp.concatenate([q1_w3, jnp.zeros_like(q1_w3)], axis=1).astype(jnp.bfloat16)
    w3_bot = jnp.concatenate([jnp.zeros_like(q2_w3), q2_w3], axis=1).astype(jnp.bfloat16)
    b3 = jnp.concatenate([q1_b3, q2_b3], axis=1).astype(jnp.float32)

    weights = (w1s, w1a, b1,
               q1_w2.astype(jnp.bfloat16), q1_b2.astype(jnp.float32),
               q2_w2.astype(jnp.bfloat16), q2_b2.astype(jnp.float32),
               w3_top, w3_bot, b3)
    return weights, ni_p, na_p


@functools.partial(jax.jit, static_argnames=("tile_m",))
def twinned_q_forward(states, actions, params, tile_m=1024):
    """Mirrors TwinnedQNetwork.forward(states, actions) -> (q1, q2)."""
    T, B = states.shape[0], states.shape[1]
    M = T * B
    states2d = states.reshape(M, -1).astype(jnp.float32)
    actions2d = actions.reshape(M, -1).astype(jnp.float32)
    num_inputs = states2d.shape[1]
    num_actions = actions2d.shape[1]

    weights, ni_p, na_p = _pack_params(params, num_inputs, num_actions)
    h = weights[3].shape[0]                 # hidden width per twin

    tm = min(tile_m, _round_up(M, 8))
    m_pad = _round_up(M, tm)

    xs = jnp.pad(states2d.astype(jnp.bfloat16),
                 ((0, m_pad - M), (0, ni_p - num_inputs)))
    xa = jnp.pad(actions2d.astype(jnp.bfloat16),
                 ((0, m_pad - M), (0, na_p - num_actions)))

    def x_spec(k):
        return pl.BlockSpec((tm, k), lambda i: (i, 0))

    def resident_spec(shape):
        # Full-array block, constant index -> stays in VMEM across grid steps.
        return pl.BlockSpec(shape, lambda i, _n=len(shape): (0,) * _n)

    d = num_inputs + num_actions
    flops = int(M) * (4 * d * h + 4 * h * h + 4 * h)
    bytes_accessed = (
        xs.size * xs.dtype.itemsize + xa.size * xa.dtype.itemsize
        + sum(int(w.size) * w.dtype.itemsize for w in weights)
        + m_pad * 2 * 4)

    q = pl.pallas_call(
        _twinq_kernel,
        out_shape=jax.ShapeDtypeStruct((m_pad, 2), jnp.float32),
        grid=(m_pad // tm,),
        in_specs=[x_spec(ni_p), x_spec(na_p)]
                 + [resident_spec(w.shape) for w in weights],
        out_specs=pl.BlockSpec((tm, 2), lambda i: (i, 0)),
        compiler_params=pltpu.CompilerParams(
            dimension_semantics=("parallel",)),
        cost_estimate=pl.CostEstimate(
            flops=flops, transcendentals=0, bytes_accessed=int(bytes_accessed)),
    )(xs, xa, *weights)

    q1 = q[:M, 0:1].reshape(T, B, 1)
    q2 = q[:M, 1:2].reshape(T, B, 1)
    return q1, q2


def _xavier_uniform(key, fan_in, fan_out):
    limit = jnp.sqrt(6.0 / (fan_in + fan_out))
    return jax.random.uniform(key, (fan_in, fan_out), jnp.float32, -limit, limit)


def init_twinned_q_params(key, num_inputs, num_actions, hidden_units=(256, 256)):
    """Xavier-uniform init matching create_linear_network shapes (f32 master weights)."""
    dims = [num_inputs + num_actions, *hidden_units, 1]

    def make_mlp(k):
        ps = []
        for i in range(len(dims) - 1):
            k, kw = jax.random.split(k)
            w = _xavier_uniform(kw, dims[i], dims[i + 1])      # (in, out)
            b = jnp.zeros((1, dims[i + 1]), jnp.float32)       # (1, out)
            ps += [w, b]
        return tuple(ps)

    k1, k2 = jax.random.split(key)
    return {"Q1": make_mlp(k1), "Q2": make_mlp(k2)}


if __name__ == "__main__":
    key = jax.random.PRNGKey(0)
    T, B = 2, 4
    num_inputs, num_actions = 16, 8

    k_p, k_s, k_a = jax.random.split(key, 3)
    params = init_twinned_q_params(k_p, num_inputs, num_actions)

    states = jax.random.normal(k_s, (T, B, num_inputs), jnp.float32)
    actions = jax.random.normal(k_a, (T, B, num_actions), jnp.float32)

    q1, q2 = twinned_q_forward(states, actions, params)
    jax.block_until_ready((q1, q2))

    # Pure-JAX reference with the same bf16 weight/activation quantization
    # (f32 accumulation), so only accumulation-order differences remain.
    M = T * B
    x = jnp.concatenate([states.reshape(M, -1), actions.reshape(M, -1)], axis=1)
    xb = x.astype(jnp.bfloat16)

    def ref_mlp(p):
        w1, b1, w2, b2, w3, b3 = p
        hh = jnp.dot(xb, w1.astype(jnp.bfloat16),
                     preferred_element_type=jnp.float32) + b1
        hh = jnp.maximum(hh, 0.0).astype(jnp.bfloat16)
        hh = jnp.dot(hh, w2.astype(jnp.bfloat16),
                     preferred_element_type=jnp.float32) + b2
        hh = jnp.maximum(hh, 0.0).astype(jnp.bfloat16)
        out = jnp.dot(hh, w3.astype(jnp.bfloat16),
                      preferred_element_type=jnp.float32) + b3
        return out.reshape(T, B, 1)

    r1, r2 = ref_mlp(params["Q1"]), ref_mlp(params["Q2"])
    assert q1.shape == (T, B, 1) and q2.shape == (T, B, 1)
    assert jnp.allclose(q1, r1, atol=5e-3, rtol=5e-3), float(jnp.max(jnp.abs(q1 - r1)))
    assert jnp.allclose(q2, r2, atol=5e-3, rtol=5e-3), float(jnp.max(jnp.abs(q2 - r2)))

    print("KERNEL_OK")
</pallas_src>

<mosaic_0001>
module attributes {stable_mosaic.version = 11 : i64} {
  func.func @_twinq_kernel(%arg0: i32, %arg1: memref<8x16xbf16, #tpu.memory_space<vmem>>, %arg2: memref<8x16xbf16, #tpu.memory_space<vmem>>, %arg3: memref<16x512xbf16, #tpu.memory_space<vmem>>, %arg4: memref<16x512xbf16, #tpu.memory_space<vmem>>, %arg5: memref<1x512xf32, #tpu.memory_space<vmem>>, %arg6: memref<256x256xbf16, #tpu.memory_space<vmem>>, %arg7: memref<1x256xf32, #tpu.memory_space<vmem>>, %arg8: memref<256x256xbf16, #tpu.memory_space<vmem>>, %arg9: memref<1x256xf32, #tpu.memory_space<vmem>>, %arg10: memref<256x2xbf16, #tpu.memory_space<vmem>>, %arg11: memref<256x2xbf16, #tpu.memory_space<vmem>>, %arg12: memref<1x2xf32, #tpu.memory_space<vmem>>, %arg13: memref<8x2xf32, #tpu.memory_space<vmem>>) attributes {dimension_semantics = [#tpu.dimension_semantics<parallel>], iteration_bounds = array<i64: 1>, scalar_prefetch = 0 : i64, scratch_operands = 0 : i64, tpu.core_type = #tpu.core_type<tc>, window_params = [{transform_indices = @transform_0, window_bounds = array<i64: 8, 16>}, {transform_indices = @transform_1, window_bounds = array<i64: 8, 16>}, {pipeline_mode = #tpu.pipeline_mode<synchronous>, transform_indices = @transform_2, window_bounds = array<i64: 16, 512>}, {pipeline_mode = #tpu.pipeline_mode<synchronous>, transform_indices = @transform_3, window_bounds = array<i64: 16, 512>}, {pipeline_mode = #tpu.pipeline_mode<synchronous>, transform_indices = @transform_4, window_bounds = array<i64: 1, 512>}, {pipeline_mode = #tpu.pipeline_mode<synchronous>, transform_indices = @transform_5, window_bounds = array<i64: 256, 256>}, {pipeline_mode = #tpu.pipeline_mode<synchronous>, transform_indices = @transform_6, window_bounds = array<i64: 1, 256>}, {pipeline_mode = #tpu.pipeline_mode<synchronous>, transform_indices = @transform_7, window_bounds = array<i64: 256, 256>}, {pipeline_mode = #tpu.pipeline_mode<synchronous>, transform_indices = @transform_8, window_bounds = array<i64: 1, 256>}, {pipeline_mode = #tpu.pipeline_mode<synchronous>, transform_indices = @transform_9, window_bounds = array<i64: 256, 2>}, {pipeline_mode = #tpu.pipeline_mode<synchronous>, transform_indices = @transform_10, window_bounds = array<i64: 256, 2>}, {pipeline_mode = #tpu.pipeline_mode<synchronous>, transform_indices = @transform_11, window_bounds = array<i64: 1, 2>}, {transform_indices = @transform_12, window_bounds = array<i64: 8, 2>}]} {
    %c0 = arith.constant 0 : index
    %c0_0 = arith.constant 0 : index
    %0 = vector.load %arg1[%c0, %c0_0] : memref<8x16xbf16, #tpu.memory_space<vmem>>, vector<8x16xbf16>
    %c0_1 = arith.constant 0 : index
    %c0_2 = arith.constant 0 : index
    %1 = vector.load %arg3[%c0_1, %c0_2] : memref<16x512xbf16, #tpu.memory_space<vmem>>, vector<16x512xbf16>
    %cst = arith.constant dense<0.000000e+00> : vector<8x512xf32>
    %2 = tpu.matmul %0, %1, %cst {dimension_numbers = #tpu.dot_dimension_numbers<[1], [0], [0], [1], [0, 0, 1, 1], [], []>} : vector<8x16xbf16>, vector<16x512xbf16>, vector<8x512xf32> -> vector<8x512xf32>
    %c0_3 = arith.constant 0 : index
    %c0_4 = arith.constant 0 : index
    %3 = vector.load %arg2[%c0_3, %c0_4] : memref<8x16xbf16, #tpu.memory_space<vmem>>, vector<8x16xbf16>
    %c0_5 = arith.constant 0 : index
    %c0_6 = arith.constant 0 : index
    %4 = vector.load %arg4[%c0_5, %c0_6] : memref<16x512xbf16, #tpu.memory_space<vmem>>, vector<16x512xbf16>
    %cst_7 = arith.constant dense<0.000000e+00> : vector<8x512xf32>
    %5 = tpu.matmul %3, %4, %cst_7 {dimension_numbers = #tpu.dot_dimension_numbers<[1], [0], [0], [1], [0, 0, 1, 1], [], []>} : vector<8x16xbf16>, vector<16x512xbf16>, vector<8x512xf32> -> vector<8x512xf32>
    %6 = arith.addf %2, %5 : vector<8x512xf32>
    %c0_8 = arith.constant 0 : index
    %c0_9 = arith.constant 0 : index
    %7 = vector.load %arg5[%c0_8, %c0_9] : memref<1x512xf32, #tpu.memory_space<vmem>>, vector<1x512xf32>
    %8 = vector.broadcast %7 : vector<1x512xf32> to vector<8x512xf32>
    %9 = arith.addf %6, %8 : vector<8x512xf32>
    %cst_10 = arith.constant 0.000000e+00 : f32
    %10 = vector.broadcast %cst_10 : f32 to vector<8x512xf32>
    %11 = arith.maximumf %9, %10 : vector<8x512xf32>
    %12 = arith.truncf %11 : vector<8x512xf32> to vector<8x512xbf16>
    %13 = vector.extract_strided_slice %12 {offsets = [0, 0], sizes = [8, 256], strides = [1, 1]} : vector<8x512xbf16> to vector<8x256xbf16>
    %14 = vector.extract_strided_slice %12 {offsets = [0, 256], sizes = [8, 256], strides = [1, 1]} : vector<8x512xbf16> to vector<8x256xbf16>
    %c0_11 = arith.constant 0 : index
    %c0_12 = arith.constant 0 : index
    %15 = vector.load %arg6[%c0_11, %c0_12] : memref<256x256xbf16, #tpu.memory_space<vmem>>, vector<256x256xbf16>
    %cst_13 = arith.constant dense<0.000000e+00> : vector<8x256xf32>
    %16 = tpu.matmul %13, %15, %cst_13 {dimension_numbers = #tpu.dot_dimension_numbers<[1], [0], [0], [1], [0, 0, 1, 1], [], []>} : vector<8x256xbf16>, vector<256x256xbf16>, vector<8x256xf32> -> vector<8x256xf32>
    %c0_14 = arith.constant 0 : index
    %c0_15 = arith.constant 0 : index
    %17 = vector.load %arg7[%c0_14, %c0_15] : memref<1x256xf32, #tpu.memory_space<vmem>>, vector<1x256xf32>
    %18 = vector.broadcast %17 : vector<1x256xf32> to vector<8x256xf32>
    %19 = arith.addf %16, %18 : vector<8x256xf32>
    %cst_16 = arith.constant 0.000000e+00 : f32
    %20 = vector.broadcast %cst_16 : f32 to vector<8x256xf32>
    %21 = arith.maximumf %19, %20 : vector<8x256xf32>
    %22 = arith.truncf %21 : vector<8x256xf32> to vector<8x256xbf16>
    %c0_17 = arith.constant 0 : index
    %c0_18 = arith.constant 0 : index
    %23 = vector.load %arg8[%c0_17, %c0_18] : memref<256x256xbf16, #tpu.memory_space<vmem>>, vector<256x256xbf16>
    %cst_19 = arith.constant dense<0.000000e+00> : vector<8x256xf32>
    %24 = tpu.matmul %14, %23, %cst_19 {dimension_numbers = #tpu.dot_dimension_numbers<[1], [0], [0], [1], [0, 0, 1, 1], [], []>} : vector<8x256xbf16>, vector<256x256xbf16>, vector<8x256xf32> -> vector<8x256xf32>
    %c0_20 = arith.constant 0 : index
    %c0_21 = arith.constant 0 : index
    %25 = vector.load %arg9[%c0_20, %c0_21] : memref<1x256xf32, #tpu.memory_space<vmem>>, vector<1x256xf32>
    %26 = vector.broadcast %25 : vector<1x256xf32> to vector<8x256xf32>
    %27 = arith.addf %24, %26 : vector<8x256xf32>
    %cst_22 = arith.constant 0.000000e+00 : f32
    %28 = vector.broadcast %cst_22 : f32 to vector<8x256xf32>
    %29 = arith.maximumf %27, %28 : vector<8x256xf32>
    %30 = arith.truncf %29 : vector<8x256xf32> to vector<8x256xbf16>
    %c0_23 = arith.constant 0 : index
    %c0_24 = arith.constant 0 : index
    %31 = vector.load %arg10[%c0_23, %c0_24] : memref<256x2xbf16, #tpu.memory_space<vmem>>, vector<256x2xbf16>
    %cst_25 = arith.constant dense<0.000000e+00> : vector<8x2xf32>
    %32 = tpu.matmul %22, %31, %cst_25 {dimension_numbers = #tpu.dot_dimension_numbers<[1], [0], [0], [1], [0, 0, 1, 1], [], []>} : vector<8x256xbf16>, vector<256x2xbf16>, vector<8x2xf32> -> vector<8x2xf32>
    %c0_26 = arith.constant 0 : index
    %c0_27 = arith.constant 0 : index
    %33 = vector.load %arg11[%c0_26, %c0_27] : memref<256x2xbf16, #tpu.memory_space<vmem>>, vector<256x2xbf16>
    %cst_28 = arith.constant dense<0.000000e+00> : vector<8x2xf32>
    %34 = tpu.matmul %30, %33, %cst_28 {dimension_numbers = #tpu.dot_dimension_numbers<[1], [0], [0], [1], [0, 0, 1, 1], [], []>} : vector<8x256xbf16>, vector<256x2xbf16>, vector<8x2xf32> -> vector<8x2xf32>
    %35 = arith.addf %32, %34 : vector<8x2xf32>
    %c0_29 = arith.constant 0 : index
    %c0_30 = arith.constant 0 : index
    %36 = vector.load %arg12[%c0_29, %c0_30] : memref<1x2xf32, #tpu.memory_space<vmem>>, vector<1x2xf32>
    %37 = vector.broadcast %36 : vector<1x2xf32> to vector<8x2xf32>
    %38 = arith.addf %35, %37 : vector<8x2xf32>
    %c0_31 = arith.constant 0 : index
    %c0_32 = arith.constant 0 : index
    %39 = vector.load %arg13[%c0_31, %c0_32] : memref<8x2xf32, #tpu.memory_space<vmem>>, vector<8x2xf32>
    tpu.vector_store %arg13[%c0_31, %c0_32], %38 {strides = array<i32>} : memref<8x2xf32, #tpu.memory_space<vmem>>, vector<8x2xf32>,
    return
  }
  func.func @transform_0(%arg0: i32) -> (i32, i32) {
    %c0_i32 = arith.constant 0 : i32
    %c0_i32_0 = arith.constant 0 : i32
    return %arg0, %c0_i32 : i32, i32
  }
  func.func @transform_1(%arg0: i32) -> (i32, i32) {
    %c0_i32 = arith.constant 0 : i32
    %c0_i32_0 = arith.constant 0 : i32
    return %arg0, %c0_i32 : i32, i32
  }
  func.func @transform_2(%arg0: i32) -> (i32, i32) {
    %c0_i32 = arith.constant 0 : i32
    %c0_i32_0 = arith.constant 0 : i32
    %c0_i32_1 = arith.constant 0 : i32
    return %c0_i32, %c0_i32_0 : i32, i32
  }
  func.func @transform_3(%arg0: i32) -> (i32, i32) {
    %c0_i32 = arith.constant 0 : i32
    %c0_i32_0 = arith.constant 0 : i32
    %c0_i32_1 = arith.constant 0 : i32
    return %c0_i32, %c0_i32_0 : i32, i32
  }
  func.func @transform_4(%arg0: i32) -> (i32, i32) {
    %c0_i32 = arith.constant 0 : i32
    %c0_i32_0 = arith.constant 0 : i32
    %c0_i32_1 = arith.constant 0 : i32
    return %c0_i32, %c0_i32_0 : i32, i32
  }
  func.func @transform_5(%arg0: i32) -> (i32, i32) {
    %c0_i32 = arith.constant 0 : i32
    %c0_i32_0 = arith.constant 0 : i32
    %c0_i32_1 = arith.constant 0 : i32
    return %c0_i32, %c0_i32_0 : i32, i32
  }
  func.func @transform_6(%arg0: i32) -> (i32, i32) {
    %c0_i32 = arith.constant 0 : i32
    %c0_i32_0 = arith.constant 0 : i32
    %c0_i32_1 = arith.constant 0 : i32
    return %c0_i32, %c0_i32_0 : i32, i32
  }
  func.func @transform_7(%arg0: i32) -> (i32, i32) {
    %c0_i32 = arith.constant 0 : i32
    %c0_i32_0 = arith.constant 0 : i32
    %c0_i32_1 = arith.constant 0 : i32
    return %c0_i32, %c0_i32_0 : i32, i32
  }
  func.func @transform_8(%arg0: i32) -> (i32, i32) {
    %c0_i32 = arith.constant 0 : i32
    %c0_i32_0 = arith.constant 0 : i32
    %c0_i32_1 = arith.constant 0 : i32
    return %c0_i32, %c0_i32_0 : i32, i32
  }
  func.func @transform_9(%arg0: i32) -> (i32, i32) {
    %c0_i32 = arith.constant 0 : i32
    %c0_i32_0 = arith.constant 0 : i32
    %c0_i32_1 = arith.constant 0 : i32
    return %c0_i32, %c0_i32_0 : i32, i32
  }
  func.func @transform_10(%arg0: i32) -> (i32, i32) {
    %c0_i32 = arith.constant 0 : i32
    %c0_i32_0 = arith.constant 0 : i32
    %c0_i32_1 = arith.constant 0 : i32
    return %c0_i32, %c0_i32_0 : i32, i32
  }
  func.func @transform_11(%arg0: i32) -> (i32, i32) {
    %c0_i32 = arith.constant 0 : i32
    %c0_i32_0 = arith.constant 0 : i32
    %c0_i32_1 = arith.constant 0 : i32
    return %c0_i32, %c0_i32_0 : i32, i32
  }
  func.func @transform_12(%arg0: i32) -> (i32, i32) {
    %c0_i32 = arith.constant 0 : i32
    %c0_i32_0 = arith.constant 0 : i32
    return %arg0, %c0_i32 : i32, i32
  }
}

</mosaic_0001>

<llo_original>
// kernel: twinned_q_forward.1
$region0: #{twinned_q_forward.1}
  #allocation0 [shape = 'u32[]', space=smem, size = 0x4, offset = 0x4, fixed_abs, tag = 'smem constant byte address 0x4 - core index']
  #allocation1 [shape = 'u32[72,128]{1,0:T(1,128)}', space=vmem, size = 0x9000, scoped, tag = 'internal scratch']
  %s0 = inlined_call_operand.vmem [shape: bf16[8,16], index: 0, kind: input, shape index: {}]
  %s1 = inlined_call_operand.vmem [shape: bf16[8,16], index: 1, kind: input, shape index: {}]
  %s2 = inlined_call_operand.vmem [shape: bf16[16,512], index: 2, kind: input, shape index: {}]
  %s3 = inlined_call_operand.vmem [shape: bf16[16,512], index: 3, kind: input, shape index: {}]
  %s4 = inlined_call_operand.vmem [shape: f32[1,512], index: 4, kind: input, shape index: {}]
  %s5 = inlined_call_operand.vmem [shape: bf16[256,256], index: 5, kind: input, shape index: {}]
  %s6 = inlined_call_operand.vmem [shape: f32[1,256], index: 6, kind: input, shape index: {}]
  %s7 = inlined_call_operand.vmem [shape: bf16[256,256], index: 7, kind: input, shape index: {}]
  %s8 = inlined_call_operand.vmem [shape: f32[1,256], index: 8, kind: input, shape index: {}]
  %s9 = inlined_call_operand.vmem [shape: bf16[256,2], index: 9, kind: input, shape index: {}]
  %s10 = inlined_call_operand.vmem [shape: bf16[256,2], index: 10, kind: input, shape index: {}]
  %s11 = inlined_call_operand.vmem [shape: f32[1,2], index: 11, kind: input, shape index: {}]
  %s12 = inlined_call_operand.vmem [shape: f32[8,2], index: 12, kind: output, shape index: {}]
  %s13 = sld [smem:[#allocation0]]
  $region58: #{twinned_q_forward.1} parent=0
    _
  %s15 = ssub.s32 1, %s13
  %s16 = scalar_select 0, %s15, %s13
  // Predicated region
  $region2: #{twinned_q_forward.1} parent=0 // pred_check
    _
  $region3: #{twinned_q_forward.1} parent=0 // pred_check_branch
    %18 = sbr.rel (0) target = $region5
  $region4: #{twinned_q_forward.1} parent=0 // pred_region
    _
  $region5: #{twinned_q_forward.1} parent=0 // pred_fallthru
    _
  // Predicated region
  $region6: #{twinned_q_forward.1} parent=0 // pred_check
    _
  $region7: #{twinned_q_forward.1} parent=0 // pred_check_branch
    %20 = sbr.rel (0) target = $region9
  $region8: #{twinned_q_forward.1} parent=0 // pred_region
    _
  $region9: #{twinned_q_forward.1} parent=0 // pred_fallthru
    _
  // Predicated region
  $region10: #{twinned_q_forward.1} parent=0 // pred_check
    _
  $region11: #{twinned_q_forward.1} parent=0 // pred_check_branch
    %22 = sbr.rel (0) target = $region13
  $region12: #{twinned_q_forward.1} parent=0 // pred_region
    _
  $region13: #{twinned_q_forward.1} parent=0 // pred_fallthru
    _
  // Predicated region
  $region14: #{twinned_q_forward.1} parent=0 // pred_check
    _
  $region15: #{twinned_q_forward.1} parent=0 // pred_check_branch
    %24 = sbr.rel (0) target = $region17
  $region16: #{twinned_q_forward.1} parent=0 // pred_region
    _
  $region17: #{twinned_q_forward.1} parent=0 // pred_fallthru
    _
  // Predicated region
  $region18: #{twinned_q_forward.1} parent=0 // pred_check
    _
  $region19: #{twinned_q_forward.1} parent=0 // pred_check_branch
    %26 = sbr.rel (0) target = $region21
  $region20: #{twinned_q_forward.1} parent=0 // pred_region
    _
  $region21: #{twinned_q_forward.1} parent=0 // pred_fallthru
    _
  // Predicated region
  $region22: #{twinned_q_forward.1} parent=0 // pred_check
    _
  $region23: #{twinned_q_forward.1} parent=0 // pred_check_branch
    %28 = sbr.rel (0) target = $region25
  $region24: #{twinned_q_forward.1} parent=0 // pred_region
    _
  $region25: #{twinned_q_forward.1} parent=0 // pred_fallthru
    _
  // Predicated region
  $region26: #{twinned_q_forward.1} parent=0 // pred_check
    _
  $region27: #{twinned_q_forward.1} parent=0 // pred_check_branch
    %30 = sbr.rel (0) target = $region29
  $region28: #{twinned_q_forward.1} parent=0 // pred_region
    _
  $region29: #{twinned_q_forward.1} parent=0 // pred_fallthru
    _
  // Predicated region
  $region30: #{twinned_q_forward.1} parent=0 // pred_check
    _
  $region31: #{twinned_q_forward.1} parent=0 // pred_check_branch
    %32 = sbr.rel (0) target = $region33
  $region32: #{twinned_q_forward.1} parent=0 // pred_region
    _
  $region33: #{twinned_q_forward.1} parent=0 // pred_fallthru
    _
  // Predicated region
  $region34: #{twinned_q_forward.1} parent=0 // pred_check
    _
  $region35: #{twinned_q_forward.1} parent=0 // pred_check_branch
    %34 = sbr.rel (0) target = $region37
  $region36: #{twinned_q_forward.1} parent=0 // pred_region
    _
  $region37: #{twinned_q_forward.1} parent=0 // pred_fallthru
    _
  // Predicated region
  $region38: #{twinned_q_forward.1} parent=0 // pred_check
    _
  $region39: #{twinned_q_forward.1} parent=0 // pred_check_branch
    %36 = sbr.rel (0) target = $region41
  $region40: #{twinned_q_forward.1} parent=0 // pred_region
    _
  $region41: #{twinned_q_forward.1} parent=0 // pred_fallthru
    _
  // Predicated region
  $region42: #{twinned_q_forward.1} parent=0 // pred_check
    _
  $region43: #{twinned_q_forward.1} parent=0 // pred_check_branch
    %38 = sbr.rel (0) target = $region45
  $region44: #{twinned_q_forward.1} parent=0 // pred_region
    _
  $region45: #{twinned_q_forward.1} parent=0 // pred_fallthru
    _
  // Predicated region
  $region46: #{twinned_q_forward.1} parent=0 // pred_check
    _
  $region47: #{twinned_q_forward.1} parent=0 // pred_check_branch
    %40 = sbr.rel (0) target = $region49
  $region48: #{twinned_q_forward.1} parent=0 // pred_region
    _
  $region49: #{twinned_q_forward.1} parent=0 // pred_fallthru
    _
  %v42 = vld [vmem:[%s0] sm:$0xf]
  %v43 = vld [vmem:[%s2] sm:$0xff]
  %v44 = vld [vmem:[%s2 + $0x8] sm:$0xff]
  %v45 = vld [vmem:[%s2 + $0x10] sm:$0xff]
  %v46 = vld [vmem:[%s2 + $0x18] sm:$0xff]
  %v47 = vld [vmem:[%s1] sm:$0xf]
  %v48 = vld [vmem:[%s3] sm:$0xff]
  %v49 = vld [vmem:[%s3 + $0x8] sm:$0xff]
  %v50 = vld [vmem:[%s3 + $0x10] sm:$0xff]
  %v51 = vld [vmem:[%s3 + $0x18] sm:$0xff]
  %v56 = vunpack.c.l.b16 %v48
  %v57 = vunpack.c.h.b16 %v48
  %v58 = vunpack.c.l.b16 %v49
  %v59 = vunpack.c.h.b16 %v49
  %v60 = vunpack.c.l.b16 %v50
  %v61 = vunpack.c.h.b16 %v50
  %v62 = vunpack.c.l.b16 %v51
  %v63 = vunpack.c.h.b16 %v51
  %v64 = vpack.c.b16 %v60, %v56
  %v65 = vpack.c.b16 %v61, %v57
  %v66 = vpack.c.b16 %v62, %v58
  %v67 = vpack.c.b16 %v63, %v59
  %vm72 = vcmask 130048
  %v74 = vsel %vm72, %v47, 0
  %76 = vmatpush.bf16.msra.mxu0 0
  %77 = vmatpush.bf16.msra.mxu0 0
  %78 = vmatpush.bf16.msra.mxu0 0
  %79 = vmatpush.bf16.msra.mxu0 0
  %80 = vmatpush.bf16.msra.mxu0 0
  %81 = vmatpush.bf16.msra.mxu0 0
  %82 = vmatpush.bf16.msra.mxu0 0
  %83 = vmatpush.bf16.msra.mxu0 %v64
  %84 = vmatmul.bf16.gmra.mxu0 %v74
  %v85 = vpop.f32.mrf.mxu0
  %v86 = vadd.f32 0.0, %v85
  %v87 = vpop.f32.mrf.mxu0
  %88 = vdwg.mxu0
  %89 = vmatpush.bf16.msra.mxu0 0
  %90 = vmatpush.bf16.msra.mxu0 0
  %91 = vmatpush.bf16.msra.mxu0 0
  %92 = vmatpush.bf16.msra.mxu0 0
  %93 = vmatpush.bf16.msra.mxu0 0
  %94 = vmatpush.bf16.msra.mxu0 0
  %95 = vmatpush.bf16.msra.mxu0 0
  %96 = vmatpush.bf16.msra.mxu0 %v65
  %97 = vmatmul.bf16.gmra.mxu0 %v74
  %v98 = vpop.f32.mrf.mxu0
  %v99 = vadd.f32 0.0, %v98
  %v100 = vpop.f32.mrf.mxu0
  %101 = vdwg.mxu0
  %102 = vmatpush.bf16.msra.mxu0 0
  %103 = vmatpush.bf16.msra.mxu0 0
  %104 = vmatpush.bf16.msra.mxu0 0
  %105 = vmatpush.bf16.msra.mxu0 0
  %106 = vmatpush.bf16.msra.mxu0 0
  %107 = vmatpush.bf16.msra.mxu0 0
  %108 = vmatpush.bf16.msra.mxu0 0
  %109 = vmatpush.bf16.msra.mxu0 %v66
  %110 = vmatmul.bf16.gmra.mxu0 %v74
  %v111 = vpop.f32.mrf.mxu0
  %v112 = vadd.f32 0.0, %v111
  %v113 = vpop.f32.mrf.mxu0
  %114 = vdwg.mxu0
  %115 = vmatpush.bf16.msra.mxu0 0
  %116 = vmatpush.bf16.msra.mxu0 0
  %117 = vmatpush.bf16.msra.mxu0 0
  %118 = vmatpush.bf16.msra.mxu0 0
  %119 = vmatpush.bf16.msra.mxu0 0
  %120 = vmatpush.bf16.msra.mxu0 0
  %121 = vmatpush.bf16.msra.mxu0 0
  %122 = vmatpush.bf16.msra.mxu0 %v67
  %123 = vmatmul.bf16.gmra.mxu0 %v74
  %v124 = vpop.f32.mrf.mxu0
  %v125 = vadd.f32 0.0, %v124
  %v126 = vpop.f32.mrf.mxu0
  %127 = vdwg.mxu0
  %v132 = vunpack.c.l.b16 %v43
  %v133 = vunpack.c.h.b16 %v43
  %v134 = vunpack.c.l.b16 %v44
  %v135 = vunpack.c.h.b16 %v44
  %v136 = vunpack.c.l.b16 %v45
  %v137 = vunpack.c.h.b16 %v45
  %v138 = vunpack.c.l.b16 %v46
  %v139 = vunpack.c.h.b16 %v46
  %v140 = vpack.c.b16 %v136, %v132
  %v141 = vpack.c.b16 %v137, %v133
  %v142 = vpack.c.b16 %v138, %v134
  %v143 = vpack.c.b16 %v139, %v135
  %v149 = vsel %vm72, %v42, 0
  %151 = vmatpush.bf16.msra.mxu0 0
  %152 = vmatpush.bf16.msra.mxu0 0
  %153 = vmatpush.bf16.msra.mxu0 0
  %154 = vmatpush.bf16.msra.mxu0 0
  %155 = vmatpush.bf16.msra.mxu0 0
  %156 = vmatpush.bf16.msra.mxu0 0
  %157 = vmatpush.bf16.msra.mxu0 0
  %158 = vmatpush.bf16.msra.mxu0 %v140
  %159 = vmatmul.bf16.gmra.mxu0 %v149
  %v160 = vpop.f32.mrf.mxu0
  %v161 = vadd.f32 %v86, %v160
  %v162 = vpop.f32.mrf.mxu0
  %163 = vdwg.mxu0
  %164 = vmatpush.bf16.msra.mxu0 0
  %165 = vmatpush.bf16.msra.mxu0 0
  %166 = vmatpush.bf16.msra.mxu0 0
  %167 = vmatpush.bf16.msra.mxu0 0
  %168 = vmatpush.bf16.msra.mxu0 0
  %169 = vmatpush.bf16.msra.mxu0 0
  %170 = vmatpush.bf16.msra.mxu0 0
  %171 = vmatpush.bf16.msra.mxu0 %v141
  %172 = vmatmul.bf16.gmra.mxu0 %v149
  %v173 = vpop.f32.mrf.mxu0
  %v174 = vadd.f32 %v99, %v173
  %v175 = vpop.f32.mrf.mxu0
  %176 = vdwg.mxu0
  %177 = vmatpush.bf16.msra.mxu0 0
  %178 = vmatpush.bf16.msra.mxu0 0
  %179 = vmatpush.bf16.msra.mxu0 0
  %180 = vmatpush.bf16.msra.mxu0 0
  %181 = vmatpush.bf16.msra.mxu0 0
  %182 = vmatpush.bf16.msra.mxu0 0
  %183 = vmatpush.bf16.msra.mxu0 0
  %184 = vmatpush.bf16.msra.mxu0 %v142
  %185 = vmatmul.bf16.gmra.mxu0 %v149
  %v186 = vpop.f32.mrf.mxu0
  %v187 = vadd.f32 %v112, %v186
  %v188 = vpop.f32.mrf.mxu0
  %189 = vdwg.mxu0
  %190 = vmatpush.bf16.msra.mxu0 0
  %191 = vmatpush.bf16.msra.mxu0 0
  %192 = vmatpush.bf16.msra.mxu0 0
  %193 = vmatpush.bf16.msra.mxu0 0
  %194 = vmatpush.bf16.msra.mxu0 0
  %195 = vmatpush.bf16.msra.mxu0 0
  %196 = vmatpush.bf16.msra.mxu0 0
  %197 = vmatpush.bf16.msra.mxu0 %v143
  %198 = vmatmul.bf16.gmra.mxu0 %v149
  %v199 = vpop.f32.mrf.mxu0
  %v200 = vadd.f32 %v125, %v199
  %v201 = vpop.f32.mrf.mxu0
  %202 = vdwg.mxu0
  %v203 = vld [vmem:[%s4] sm:$0xf]
  %v205 = vperm.slane %v203, 0
  %v206 = vperm.slane %v203, 1
  %v207 = vperm.slane %v203, 2
  %v208 = vperm.slane %v203, 3
  %v213 = vadd.f32 %v161, %v205
  %v214 = vadd.f32 %v174, %v206
  %v215 = vadd.f32 %v187, %v207
  %v216 = vadd.f32 %v200, %v208
  %v217 = vmax.f32 %v213, 0.0
  %v218 = vmax.f32 %v214, 0.0
  %v219 = vmax.f32 %v215, 0.0
  %v220 = vmax.f32 %v216, 0.0
  %v221 = vpack.c.bf16 %v218, %v217
  %v222 = vpack.c.bf16 %v220, %v219
  %v223 = vld [vmem:[%s5] sm:$0xff]
  %v224 = vld [vmem:[%s5 + $0x8] sm:$0xff]
  %v225 = vld [vmem:[%s5 + $0x10] sm:$0xff]
  %v226 = vld [vmem:[%s5 + $0x18] sm:$0xff]
  %v227 = vld [vmem:[%s5 + $0x20] sm:$0xff]
  %v228 = vld [vmem:[%s5 + $0x28] sm:$0xff]
  %v229 = vld [vmem:[%s5 + $0x30] sm:$0xff]
  %v230 = vld [vmem:[%s5 + $0x38] sm:$0xff]
  %v231 = vld [vmem:[%s5 + $0x40] sm:$0xff]
  %v232 = vld [vmem:[%s5 + $0x48] sm:$0xff]
  %v233 = vld [vmem:[%s5 + $0x50] sm:$0xff]
  %v234 = vld [vmem:[%s5 + $0x58] sm:$0xff]
  %v235 = vld [vmem:[%s5 + $0x60] sm:$0xff]
  %v236 = vld [vmem:[%s5 + $0x68] sm:$0xff]
  %v237 = vld [vmem:[%s5 + $0x70] sm:$0xff]
  %v238 = vld [vmem:[%s5 + $0x78] sm:$0xff]
  %v239 = vld [vmem:[%s5 + $0x80] sm:$0xff]
  %v240 = vld [vmem:[%s5 + $0x88] sm:$0xff]
  %v241 = vld [vmem:[%s5 + $0x90] sm:$0xff]
  %v242 = vld [vmem:[%s5 + $0x98] sm:$0xff]
  %v243 = vld [vmem:[%s5 + $0xa0] sm:$0xff]
  %v244 = vld [vmem:[%s5 + $0xa8] sm:$0xff]
  %v245 = vld [vmem:[%s5 + $0xb0] sm:$0xff]
  %v246 = vld [vmem:[%s5 + $0xb8] sm:$0xff]
  %v247 = vld [vmem:[%s5 + $0xc0] sm:$0xff]
  %v248 = vld [vmem:[%s5 + $0xc8] sm:$0xff]
  %v249 = vld [vmem:[%s5 + $0xd0] sm:$0xff]
  %v250 = vld [vmem:[%s5 + $0xd8] sm:$0xff]
  %v251 = vld [vmem:[%s5 + $0xe0] sm:$0xff]
  %v252 = vld [vmem:[%s5 + $0xe8] sm:$0xff]
  %v253 = vld [vmem:[%s5 + $0xf0] sm:$0xff]
  %v254 = vld [vmem:[%s5 + $0xf8] sm:$0xff]
  %v255 = vld [vmem:[%s6] sm:$0x3]
  %v257 = vperm.slane %v255, 0
  %v258 = vperm.slane %v255, 1
  %v262 = vunpack.c.l.b16 %v221
  %v263 = vunpack.c.h.b16 %v221
  %v264 = vpack.c.b16 %v262, %v262
  %v265 = vpack.c.b16 %v263, %v263
  %v300 = vunpack.c.l.b16 %v223
  %v301 = vunpack.c.h.b16 %v223
  %v302 = vunpack.c.l.b16 %v224
  %v303 = vunpack.c.h.b16 %v224
  %v304 = vunpack.c.l.b16 %v225
  %v305 = vunpack.c.h.b16 %v225
  %v306 = vunpack.c.l.b16 %v226
  %v307 = vunpack.c.h.b16 %v226
  %v308 = vunpack.c.l.b16 %v227
  %v309 = vunpack.c.h.b16 %v227
  %v310 = vunpack.c.l.b16 %v228
  %v311 = vunpack.c.h.b16 %v228
  %v312 = vunpack.c.l.b16 %v229
  %v313 = vunpack.c.h.b16 %v229
  %v314 = vunpack.c.l.b16 %v230
  %v315 = vunpack.c.h.b16 %v230
  %v316 = vunpack.c.l.b16 %v231
  %v317 = vunpack.c.h.b16 %v231
  %v318 = vunpack.c.l.b16 %v232
  %v319 = vunpack.c.h.b16 %v232
  %v320 = vunpack.c.l.b16 %v233
  %v321 = vunpack.c.h.b16 %v233
  %v322 = vunpack.c.l.b16 %v234
  %v323 = vunpack.c.h.b16 %v234
  %v324 = vunpack.c.l.b16 %v235
  %v325 = vunpack.c.h.b16 %v235
  %v326 = vunpack.c.l.b16 %v236
  %v327 = vunpack.c.h.b16 %v236
  %v328 = vunpack.c.l.b16 %v237
  %v329 = vunpack.c.h.b16 %v237
  %v330 = vunpack.c.l.b16 %v238
  %v331 = vunpack.c.h.b16 %v238
  %v332 = vunpack.c.l.b16 %v239
  %v333 = vunpack.c.h.b16 %v239
  %v334 = vunpack.c.l.b16 %v240
  %v335 = vunpack.c.h.b16 %v240
  %v336 = vunpack.c.l.b16 %v241
  %v337 = vunpack.c.h.b16 %v241
  %v338 = vunpack.c.l.b16 %v242
  %v339 = vunpack.c.h.b16 %v242
  %v340 = vunpack.c.l.b16 %v243
  %v341 = vunpack.c.h.b16 %v243
  %v342 = vunpack.c.l.b16 %v244
  %v343 = vunpack.c.h.b16 %v244
  %v344 = vunpack.c.l.b16 %v245
  %v345 = vunpack.c.h.b16 %v245
  %v346 = vunpack.c.l.b16 %v246
  %v347 = vunpack.c.h.b16 %v246
  %v348 = vunpack.c.l.b16 %v247
  %v349 = vunpack.c.h.b16 %v247
  %v350 = vunpack.c.l.b16 %v248
  %v351 = vunpack.c.h.b16 %v248
  %v352 = vunpack.c.l.b16 %v249
  %v353 = vunpack.c.h.b16 %v249
  %v354 = vunpack.c.l.b16 %v250
  %v355 = vunpack.c.h.b16 %v250
  %v356 = vunpack.c.l.b16 %v251
  %v357 = vunpack.c.h.b16 %v251
  %v358 = vunpack.c.l.b16 %v252
  %v359 = vunpack.c.h.b16 %v252
  %v360 = vunpack.c.l.b16 %v253
  %v361 = vunpack.c.h.b16 %v253
  %v362 = vunpack.c.l.b16 %v254
  %v363 = vunpack.c.h.b16 %v254
  %v364 = vpack.c.b16 %v302, %v300
  %v365 = vpack.c.b16 %v303, %v301
  %v366 = vpack.c.b16 %v306, %v304
  %v367 = vpack.c.b16 %v307, %v305
  %v368 = vpack.c.b16 %v310, %v308
  %v369 = vpack.c.b16 %v311, %v309
  %v370 = vpack.c.b16 %v314, %v312
  %v371 = vpack.c.b16 %v315, %v313
  %v372 = vpack.c.b16 %v318, %v316
  %v373 = vpack.c.b16 %v319, %v317
  %v374 = vpack.c.b16 %v322, %v320
  %v375 = vpack.c.b16 %v323, %v321
  %v376 = vpack.c.b16 %v326, %v324
  %v377 = vpack.c.b16 %v327, %v325
  %v378 = vpack.c.b16 %v330, %v328
  %v379 = vpack.c.b16 %v331, %v329
  %v380 = vpack.c.b16 %v334, %v332
  %v381 = vpack.c.b16 %v335, %v333
  %v382 = vpack.c.b16 %v338, %v336
  %v383 = vpack.c.b16 %v339, %v337
  %v384 = vpack.c.b16 %v342, %v340
  %v385 = vpack.c.b16 %v343, %v341
  %v386 = vpack.c.b16 %v346, %v344
  %v387 = vpack.c.b16 %v347, %v345
  %v388 = vpack.c.b16 %v350, %v348
  %v389 = vpack.c.b16 %v351, %v349
  %v390 = vpack.c.b16 %v354, %v352
  %v391 = vpack.c.b16 %v355, %v353
  %v392 = vpack.c.b16 %v358, %v356
  %v393 = vpack.c.b16 %v359, %v357
  %v394 = vpack.c.b16 %v362, %v360
  %v395 = vpack.c.b16 %v363, %v361
  %428 = vmatpush.bf16.msra.mxu0 %v378
  %429 = vmatpush.bf16.msra.mxu0 %v376
  %430 = vmatpush.bf16.msra.mxu0 %v374
  %431 = vmatpush.bf16.msra.mxu0 %v372
  %432 = vmatpush.bf16.msra.mxu0 %v370
  %433 = vmatpush.bf16.msra.mxu0 %v368
  %434 = vmatpush.bf16.msra.mxu0 %v366
  %435 = vmatpush.bf16.msra.mxu0 %v364
  %436 = vmatmul.bf16.gmra.mxu0 %v264
  %v437 = vpop.f32.mrf.mxu0
  %v438 = vadd.f32 %v257, %v437
  %v439 = vpop.f32.mrf.mxu0
  %440 = vdwg.mxu0
  %441 = vmatpush.bf16.msra.mxu0 %v394
  %442 = vmatpush.bf16.msra.mxu0 %v392
  %443 = vmatpush.bf16.msra.mxu0 %v390
  %444 = vmatpush.bf16.msra.mxu0 %v388
  %445 = vmatpush.bf16.msra.mxu0 %v386
  %446 = vmatpush.bf16.msra.mxu0 %v384
  %447 = vmatpush.bf16.msra.mxu0 %v382
  %448 = vmatpush.bf16.msra.mxu0 %v380
  %449 = vmatmul.bf16.gmra.mxu0 %v265
  %v450 = vpop.f32.mrf.mxu0
  %v451 = vadd.f32 %v438, %v450
  %v452 = vpop.f32.mrf.mxu0
  %453 = vdwg.mxu0
  %454 = vmatpush.bf16.msra.mxu0 %v379
  %455 = vmatpush.bf16.msra.mxu0 %v377
  %456 = vmatpush.bf16.msra.mxu0 %v375
  %457 = vmatpush.bf16.msra.mxu0 %v373
  %458 = vmatpush.bf16.msra.mxu0 %v371
  %459 = vmatpush.bf16.msra.mxu0 %v369
  %460 = vmatpush.bf16.msra.mxu0 %v367
  %461 = vmatpush.bf16.msra.mxu0 %v365
  %462 = vmatmul.bf16.gmra.mxu0 %v264
  %v463 = vpop.f32.mrf.mxu0
  %v464 = vadd.f32 %v258, %v463
  %v465 = vpop.f32.mrf.mxu0
  %466 = vdwg.mxu0
  %467 = vmatpush.bf16.msra.mxu0 %v395
  %468 = vmatpush.bf16.msra.mxu0 %v393
  %469 = vmatpush.bf16.msra.mxu0 %v391
  %470 = vmatpush.bf16.msra.mxu0 %v389
  %471 = vmatpush.bf16.msra.mxu0 %v387
  %472 = vmatpush.bf16.msra.mxu0 %v385
  %473 = vmatpush.bf16.msra.mxu0 %v383
  %474 = vmatpush.bf16.msra.mxu0 %v381
  %475 = vmatmul.bf16.gmra.mxu0 %v265
  %v476 = vpop.f32.mrf.mxu0
  %v477 = vadd.f32 %v464, %v476
  %v478 = vpop.f32.mrf.mxu0
  %479 = vdwg.mxu0
  %v480 = vmax.f32 %v451, 0.0
  %v481 = vmax.f32 %v477, 0.0
  %v482 = vpack.c.bf16 %v480, %v480
  %v483 = vpack.c.bf16 %v481, %v481
  %v484 = vld [vmem:[%s7] sm:$0xff]
  %v485 = vld [vmem:[%s7 + $0x8] sm:$0xff]
  %v486 = vld [vmem:[%s7 + $0x10] sm:$0xff]
  %v487 = vld [vmem:[%s7 + $0x18] sm:$0xff]
  %v488 = vld [vmem:[%s7 + $0x20] sm:$0xff]
  %v489 = vld [vmem:[%s7 + $0x28] sm:$0xff]
  %v490 = vld [vmem:[%s7 + $0x30] sm:$0xff]
  %v491 = vld [vmem:[%s7 + $0x38] sm:$0xff]
  %v492 = vld [vmem:[%s7 + $0x40] sm:$0xff]
  %v493 = vld [vmem:[%s7 + $0x48] sm:$0xff]
  %v494 = vld [vmem:[%s7 + $0x50] sm:$0xff]
  %v495 = vld [vmem:[%s7 + $0x58] sm:$0xff]
  %v496 = vld [vmem:[%s7 + $0x60] sm:$0xff]
  %v497 = vld [vmem:[%s7 + $0x68] sm:$0xff]
  %v498 = vld [vmem:[%s7 + $0x70] sm:$0xff]
  %v499 = vld [vmem:[%s7 + $0x78] sm:$0xff]
  %v500 = vld [vmem:[%s7 + $0x80] sm:$0xff]
  %v501 = vld [vmem:[%s7 + $0x88] sm:$0xff]
  %v502 = vld [vmem:[%s7 + $0x90] sm:$0xff]
  %v503 = vld [vmem:[%s7 + $0x98] sm:$0xff]
  %v504 = vld [vmem:[%s7 + $0xa0] sm:$0xff]
  %v505 = vld [vmem:[%s7 + $0xa8] sm:$0xff]
  %v506 = vld [vmem:[%s7 + $0xb0] sm:$0xff]
  %v507 = vld [vmem:[%s7 + $0xb8] sm:$0xff]
  %v508 = vld [vmem:[%s7 + $0xc0] sm:$0xff]
  %v509 = vld [vmem:[%s7 + $0xc8] sm:$0xff]
  %v510 = vld [vmem:[%s7 + $0xd0] sm:$0xff]
  %v511 = vld [vmem:[%s7 + $0xd8] sm:$0xff]
  %v512 = vld [vmem:[%s7 + $0xe0] sm:$0xff]
  %v513 = vld [vmem:[%s7 + $0xe8] sm:$0xff]
  %v514 = vld [vmem:[%s7 + $0xf0] sm:$0xff]
  %v515 = vld [vmem:[%s7 + $0xf8] sm:$0xff]
  %v516 = vld [vmem:[%s8] sm:$0x3]
  %v518 = vperm.slane %v516, 0
  %v519 = vperm.slane %v516, 1
  %v523 = vunpack.c.l.b16 %v222
  %v524 = vunpack.c.h.b16 %v222
  %v525 = vpack.c.b16 %v523, %v523
  %v526 = vpack.c.b16 %v524, %v524
  %v561 = vunpack.c.l.b16 %v484
  %v562 = vunpack.c.h.b16 %v484
  %v563 = vunpack.c.l.b16 %v485
  %v564 = vunpack.c.h.b16 %v485
  %v565 = vunpack.c.l.b16 %v486
  %v566 = vunpack.c.h.b16 %v486
  %v567 = vunpack.c.l.b16 %v487
  %v568 = vunpack.c.h.b16 %v487
  %v569 = vunpack.c.l.b16 %v488
  %v570 = vunpack.c.h.b16 %v488
  %v571 = vunpack.c.l.b16 %v489
  %v572 = vunpack.c.h.b16 %v489
  %v573 = vunpack.c.l.b16 %v490
  %v574 = vunpack.c.h.b16 %v490
  %v575 = vunpack.c.l.b16 %v491
  %v576 = vunpack.c.h.b16 %v491
  %v577 = vunpack.c.l.b16 %v492
  %v578 = vunpack.c.h.b16 %v492
  %v579 = vunpack.c.l.b16 %v493
  %v580 = vunpack.c.h.b16 %v493
  %v581 = vunpack.c.l.b16 %v494
  %v582 = vunpack.c.h.b16 %v494
  %v583 = vunpack.c.l.b16 %v495
  %v584 = vunpack.c.h.b16 %v495
  %v585 = vunpack.c.l.b16 %v496
  %v586 = vunpack.c.h.b16 %v496
  %v587 = vunpack.c.l.b16 %v497
  %v588 = vunpack.c.h.b16 %v497
  %v589 = vunpack.c.l.b16 %v498
  %v590 = vunpack.c.h.b16 %v498
  %v591 = vunpack.c.l.b16 %v499
  %v592 = vunpack.c.h.b16 %v499
  %v593 = vunpack.c.l.b16 %v500
  %v594 = vunpack.c.h.b16 %v500
  %v595 = vunpack.c.l.b16 %v501
  %v596 = vunpack.c.h.b16 %v501
  %v597 = vunpack.c.l.b16 %v502
  %v598 = vunpack.c.h.b16 %v502
  %v599 = vunpack.c.l.b16 %v503
  %v600 = vunpack.c.h.b16 %v503
  %v601 = vunpack.c.l.b16 %v504
  %v602 = vunpack.c.h.b16 %v504
  %v603 = vunpack.c.l.b16 %v505
  %v604 = vunpack.c.h.b16 %v505
  %v605 = vunpack.c.l.b16 %v506
  %v606 = vunpack.c.h.b16 %v506
  %v607 = vunpack.c.l.b16 %v507
  %v608 = vunpack.c.h.b16 %v507
  %v609 = vunpack.c.l.b16 %v508
  %v610 = vunpack.c.h.b16 %v508
  %v611 = vunpack.c.l.b16 %v509
  %v612 = vunpack.c.h.b16 %v509
  %v613 = vunpack.c.l.b16 %v510
  %v614 = vunpack.c.h.b16 %v510
  %v615 = vunpack.c.l.b16 %v511
  %v616 = vunpack.c.h.b16 %v511
  %v617 = vunpack.c.l.b16 %v512
  %v618 = vunpack.c.h.b16 %v512
  %v619 = vunpack.c.l.b16 %v513
  %v620 = vunpack.c.h.b16 %v513
  %v621 = vunpack.c.l.b16 %v514
  %v622 = vunpack.c.h.b16 %v514
  %v623 = vunpack.c.l.b16 %v515
  %v624 = vunpack.c.h.b16 %v515
  %v625 = vpack.c.b16 %v563, %v561
  %v626 = vpack.c.b16 %v564, %v562
  %v627 = vpack.c.b16 %v567, %v565
  %v628 = vpack.c.b16 %v568, %v566
  %v629 = vpack.c.b16 %v571, %v569
  %v630 = vpack.c.b16 %v572, %v570
  %v631 = vpack.c.b16 %v575, %v573
  %v632 = vpack.c.b16 %v576, %v574
  %v633 = vpack.c.b16 %v579, %v577
  %v634 = vpack.c.b16 %v580, %v578
  %v635 = vpack.c.b16 %v583, %v581
  %v636 = vpack.c.b16 %v584, %v582
  %v637 = vpack.c.b16 %v587, %v585
  %v638 = vpack.c.b16 %v588, %v586
  %v639 = vpack.c.b16 %v591, %v589
  %v640 = vpack.c.b16 %v592, %v590
  %v641 = vpack.c.b16 %v595, %v593
  %v642 = vpack.c.b16 %v596, %v594
  %v643 = vpack.c.b16 %v599, %v597
  %v644 = vpack.c.b16 %v600, %v598
  %v645 = vpack.c.b16 %v603, %v601
  %v646 = vpack.c.b16 %v604, %v602
  %v647 = vpack.c.b16 %v607, %v605
  %v648 = vpack.c.b16 %v608, %v606
  %v649 = vpack.c.b16 %v611, %v609
  %v650 = vpack.c.b16 %v612, %v610
  %v651 = vpack.c.b16 %v615, %v613
  %v652 = vpack.c.b16 %v616, %v614
  %v653 = vpack.c.b16 %v619, %v617
  %v654 = vpack.c.b16 %v620, %v618
  %v655 = vpack.c.b16 %v623, %v621
  %v656 = vpack.c.b16 %v624, %v622
  %689 = vmatpush.bf16.msra.mxu0 %v639
  %690 = vmatpush.bf16.msra.mxu0 %v637
  %691 = vmatpush.bf16.msra.mxu0 %v635
  %692 = vmatpush.bf16.msra.mxu0 %v633
  %693 = vmatpush.bf16.msra.mxu0 %v631
  %694 = vmatpush.bf16.msra.mxu0 %v629
  %695 = vmatpush.bf16.msra.mxu0 %v627
  %696 = vmatpush.bf16.msra.mxu0 %v625
  %697 = vmatmul.bf16.gmra.mxu0 %v525
  %v698 = vpop.f32.mrf.mxu0
  %v699 = vadd.f32 %v518, %v698
  %v700 = vpop.f32.mrf.mxu0
  %701 = vdwg.mxu0
  %702 = vmatpush.bf16.msra.mxu0 %v655
  %703 = vmatpush.bf16.msra.mxu0 %v653
  %704 = vmatpush.bf16.msra.mxu0 %v651
  %705 = vmatpush.bf16.msra.mxu0 %v649
  %706 = vmatpush.bf16.msra.mxu0 %v647
  %707 = vmatpush.bf16.msra.mxu0 %v645
  %708 = vmatpush.bf16.msra.mxu0 %v643
  %709 = vmatpush.bf16.msra.mxu0 %v641
  %710 = vmatmul.bf16.gmra.mxu0 %v526
  %v711 = vpop.f32.mrf.mxu0
  %v712 = vadd.f32 %v699, %v711
  %v713 = vpop.f32.mrf.mxu0
  %714 = vdwg.mxu0
  %715 = vmatpush.bf16.msra.mxu0 %v640
  %716 = vmatpush.bf16.msra.mxu0 %v638
  %717 = vmatpush.bf16.msra.mxu0 %v636
  %718 = vmatpush.bf16.msra.mxu0 %v634
  %719 = vmatpush.bf16.msra.mxu0 %v632
  %720 = vmatpush.bf16.msra.mxu0 %v630
  %721 = vmatpush.bf16.msra.mxu0 %v628
  %722 = vmatpush.bf16.msra.mxu0 %v626
  %723 = vmatmul.bf16.gmra.mxu0 %v525
  %v724 = vpop.f32.mrf.mxu0
  %v725 = vadd.f32 %v519, %v724
  %v726 = vpop.f32.mrf.mxu0
  %727 = vdwg.mxu0
  %728 = vmatpush.bf16.msra.mxu0 %v656
  %729 = vmatpush.bf16.msra.mxu0 %v654
  %730 = vmatpush.bf16.msra.mxu0 %v652
  %731 = vmatpush.bf16.msra.mxu0 %v650
  %732 = vmatpush.bf16.msra.mxu0 %v648
  %733 = vmatpush.bf16.msra.mxu0 %v646
  %734 = vmatpush.bf16.msra.mxu0 %v644
  %735 = vmatpush.bf16.msra.mxu0 %v642
  %736 = vmatmul.bf16.gmra.mxu0 %v526
  %v737 = vpop.f32.mrf.mxu0
  %v738 = vadd.f32 %v725, %v737
  %v739 = vpop.f32.mrf.mxu0
  %740 = vdwg.mxu0
  %v741 = vmax.f32 %v712, 0.0
  %v742 = vmax.f32 %v738, 0.0
  %v743 = vpack.c.bf16 %v741, %v741
  %v744 = vpack.c.bf16 %v742, %v742
  %v745 = vld [vmem:[%s9] sm:$0xf]
  %v746 = vld [vmem:[%s9 + $0x4] sm:$0xf]
  %v747 = vld [vmem:[%s9 + $0x8] sm:$0xf]
  %v748 = vld [vmem:[%s9 + $0xc] sm:$0xf]
  %v749 = vld [vmem:[%s9 + $0x10] sm:$0xf]
  %v750 = vld [vmem:[%s9 + $0x14] sm:$0xf]
  %v751 = vld [vmem:[%s9 + $0x18] sm:$0xf]
  %v752 = vld [vmem:[%s9 + $0x1c] sm:$0xf]
  %v753 = vld [vmem:[%s9 + $0x20] sm:$0xf]
  %v754 = vld [vmem:[%s9 + $0x24] sm:$0xf]
  %v755 = vld [vmem:[%s9 + $0x28] sm:$0xf]
  %v756 = vld [vmem:[%s9 + $0x2c] sm:$0xf]
  %v757 = vld [vmem:[%s9 + $0x30] sm:$0xf]
  %v758 = vld [vmem:[%s9 + $0x34] sm:$0xf]
  %v759 = vld [vmem:[%s9 + $0x38] sm:$0xf]
  %v760 = vld [vmem:[%s9 + $0x3c] sm:$0xf]
  %v761 = vld [vmem:[%s9 + $0x40] sm:$0xf]
  %v762 = vld [vmem:[%s9 + $0x44] sm:$0xf]
  %v763 = vld [vmem:[%s9 + $0x48] sm:$0xf]
  %v764 = vld [vmem:[%s9 + $0x4c] sm:$0xf]
  %v765 = vld [vmem:[%s9 + $0x50] sm:$0xf]
  %v766 = vld [vmem:[%s9 + $0x54] sm:$0xf]
  %v767 = vld [vmem:[%s9 + $0x58] sm:$0xf]
  %v768 = vld [vmem:[%s9 + $0x5c] sm:$0xf]
  %v769 = vld [vmem:[%s9 + $0x60] sm:$0xf]
  %v770 = vld [vmem:[%s9 + $0x64] sm:$0xf]
  %v771 = vld [vmem:[%s9 + $0x68] sm:$0xf]
  %v772 = vld [vmem:[%s9 + $0x6c] sm:$0xf]
  %v773 = vld [vmem:[%s9 + $0x70] sm:$0xf]
  %v774 = vld [vmem:[%s9 + $0x74] sm:$0xf]
  %v775 = vld [vmem:[%s9 + $0x78] sm:$0xf]
  %v776 = vld [vmem:[%s9 + $0x7c] sm:$0xf]
  %v777 = vld [vmem:[%s10] sm:$0xf]
  %v778 = vld [vmem:[%s10 + $0x4] sm:$0xf]
  %v779 = vld [vmem:[%s10 + $0x8] sm:$0xf]
  %v780 = vld [vmem:[%s10 + $0xc] sm:$0xf]
  %v781 = vld [vmem:[%s10 + $0x10] sm:$0xf]
  %v782 = vld [vmem:[%s10 + $0x14] sm:$0xf]
  %v783 = vld [vmem:[%s10 + $0x18] sm:$0xf]
  %v784 = vld [vmem:[%s10 + $0x1c] sm:$0xf]
  %v785 = vld [vmem:[%s10 + $0x20] sm:$0xf]
  %v786 = vld [vmem:[%s10 + $0x24] sm:$0xf]
  %v787 = vld [vmem:[%s10 + $0x28] sm:$0xf]
  %v788 = vld [vmem:[%s10 + $0x2c] sm:$0xf]
  %v789 = vld [vmem:[%s10 + $0x30] sm:$0xf]
  %v790 = vld [vmem:[%s10 + $0x34] sm:$0xf]
  %v791 = vld [vmem:[%s10 + $0x38] sm:$0xf]
  %v792 = vld [vmem:[%s10 + $0x3c] sm:$0xf]
  %v793 = vld [vmem:[%s10 + $0x40] sm:$0xf]
  %v794 = vld [vmem:[%s10 + $0x44] sm:$0xf]
  %v795 = vld [vmem:[%s10 + $0x48] sm:$0xf]
  %v796 = vld [vmem:[%s10 + $0x4c] sm:$0xf]
  %v797 = vld [vmem:[%s10 + $0x50] sm:$0xf]
  %v798 = vld [vmem:[%s10 + $0x54] sm:$0xf]
  %v799 = vld [vmem:[%s10 + $0x58] sm:$0xf]
  %v800 = vld [vmem:[%s10 + $0x5c] sm:$0xf]
  %v801 = vld [vmem:[%s10 + $0x60] sm:$0xf]
  %v802 = vld [vmem:[%s10 + $0x64] sm:$0xf]
  %v803 = vld [vmem:[%s10 + $0x68] sm:$0xf]
  %v804 = vld [vmem:[%s10 + $0x6c] sm:$0xf]
  %v805 = vld [vmem:[%s10 + $0x70] sm:$0xf]
  %v806 = vld [vmem:[%s10 + $0x74] sm:$0xf]
  %v807 = vld [vmem:[%s10 + $0x78] sm:$0xf]
  %v808 = vld [vmem:[%s10 + $0x7c] sm:$0xf]
  %v841 = vunpack.c.l.b16 %v777
  %v842 = vunpack.c.l.b16 %v778
  %v843 = vunpack.c.l.b16 %v779
  %v844 = vunpack.c.l.b16 %v780
  %v845 = vunpack.c.l.b16 %v781
  %v846 = vunpack.c.l.b16 %v782
  %v847 = vunpack.c.l.b16 %v783
  %v848 = vunpack.c.l.b16 %v784
  %v849 = vunpack.c.l.b16 %v785
  %v850 = vunpack.c.l.b16 %v786
  %v851 = vunpack.c.l.b16 %v787
  %v852 = vunpack.c.l.b16 %v788
  %v853 = vunpack.c.l.b16 %v789
  %v854 = vunpack.c.l.b16 %v790
  %v855 = vunpack.c.l.b16 %v791
  %v856 = vunpack.c.l.b16 %v792
  %v857 = vunpack.c.l.b16 %v793
  %v858 = vunpack.c.l.b16 %v794
  %v859 = vunpack.c.l.b16 %v795
  %v860 = vunpack.c.l.b16 %v796
  %v861 = vunpack.c.l.b16 %v797
  %v862 = vunpack.c.l.b16 %v798
  %v863 = vunpack.c.l.b16 %v799
  %v864 = vunpack.c.l.b16 %v800
  %v865 = vunpack.c.l.b16 %v801
  %v866 = vunpack.c.l.b16 %v802
  %v867 = vunpack.c.l.b16 %v803
  %v868 = vunpack.c.l.b16 %v804
  %v869 = vunpack.c.l.b16 %v805
  %v870 = vunpack.c.l.b16 %v806
  %v871 = vunpack.c.l.b16 %v807
  %v872 = vunpack.c.l.b16 %v808
  %v873 = vpack.c.b16 %v842, %v841
  %v874 = vpack.c.b16 %v844, %v843
  %v875 = vpack.c.b16 %v846, %v845
  %v876 = vpack.c.b16 %v848, %v847
  %v877 = vpack.c.b16 %v850, %v849
  %v878 = vpack.c.b16 %v852, %v851
  %v879 = vpack.c.b16 %v854, %v853
  %v880 = vpack.c.b16 %v856, %v855
  %v881 = vpack.c.b16 %v858, %v857
  %v882 = vpack.c.b16 %v860, %v859
  %v883 = vpack.c.b16 %v862, %v861
  %v884 = vpack.c.b16 %v864, %v863
  %v885 = vpack.c.b16 %v866, %v865
  %v886 = vpack.c.b16 %v868, %v867
  %v887 = vpack.c.b16 %v870, %v869
  %v888 = vpack.c.b16 %v872, %v871
  %905 = vmatpush.bf16.msra.mxu0 %v880
  %906 = vmatpush.bf16.msra.mxu0 %v879
  %907 = vmatpush.bf16.msra.mxu0 %v878
  %908 = vmatpush.bf16.msra.mxu0 %v877
  %909 = vmatpush.bf16.msra.mxu0 %v876
  %910 = vmatpush.bf16.msra.mxu0 %v875
  %911 = vmatpush.bf16.msra.mxu0 %v874
  %912 = vmatpush.bf16.msra.mxu0 %v873
  %913 = vmatmul.bf16.gmra.mxu0 %v743
  %v914 = vpop.f32.mrf.mxu0
  %v915 = vadd.f32 0.0, %v914
  %v916 = vpop.f32.mrf.mxu0
  %917 = vdwg.mxu0
  %918 = vmatpush.bf16.msra.mxu0 %v888
  %919 = vmatpush.bf16.msra.mxu0 %v887
  %920 = vmatpush.bf16.msra.mxu0 %v886
  %921 = vmatpush.bf16.msra.mxu0 %v885
  %922 = vmatpush.bf16.msra.mxu0 %v884
  %923 = vmatpush.bf16.msra.mxu0 %v883
  %924 = vmatpush.bf16.msra.mxu0 %v882
  %925 = vmatpush.bf16.msra.mxu0 %v881
  %926 = vmatmul.bf16.gmra.mxu0 %v744
  %v927 = vpop.f32.mrf.mxu0
  %v928 = vadd.f32 %v915, %v927
  %v929 = vpop.f32.mrf.mxu0
  %930 = vdwg.mxu0
  %v963 = vunpack.c.l.b16 %v745
  %v964 = vunpack.c.l.b16 %v746
  %v965 = vunpack.c.l.b16 %v747
  %v966 = vunpack.c.l.b16 %v748
  %v967 = vunpack.c.l.b16 %v749
  %v968 = vunpack.c.l.b16 %v750
  %v969 = vunpack.c.l.b16 %v751
  %v970 = vunpack.c.l.b16 %v752
  %v971 = vunpack.c.l.b16 %v753
  %v972 = vunpack.c.l.b16 %v754
  %v973 = vunpack.c.l.b16 %v755
  %v974 = vunpack.c.l.b16 %v756
  %v975 = vunpack.c.l.b16 %v757
  %v976 = vunpack.c.l.b16 %v758
  %v977 = vunpack.c.l.b16 %v759
  %v978 = vunpack.c.l.b16 %v760
  %v979 = vunpack.c.l.b16 %v761
  %v980 = vunpack.c.l.b16 %v762
  %v981 = vunpack.c.l.b16 %v763
  %v982 = vunpack.c.l.b16 %v764
  %v983 = vunpack.c.l.b16 %v765
  %v984 = vunpack.c.l.b16 %v766
  %v985 = vunpack.c.l.b16 %v767
  %v986 = vunpack.c.l.b16 %v768
  %v987 = vunpack.c.l.b16 %v769
  %v988 = vunpack.c.l.b16 %v770
  %v989 = vunpack.c.l.b16 %v771
  %v990 = vunpack.c.l.b16 %v772
  %v991 = vunpack.c.l.b16 %v773
  %v992 = vunpack.c.l.b16 %v774
  %v993 = vunpack.c.l.b16 %v775
  %v994 = vunpack.c.l.b16 %v776
  %v995 = vpack.c.b16 %v964, %v963
  %v996 = vpack.c.b16 %v966, %v965
  %v997 = vpack.c.b16 %v968, %v967
  %v998 = vpack.c.b16 %v970, %v969
  %v999 = vpack.c.b16 %v972, %v971
  %v1000 = vpack.c.b16 %v974, %v973
  %v1001 = vpack.c.b16 %v976, %v975
  %v1002 = vpack.c.b16 %v978, %v977
  %v1003 = vpack.c.b16 %v980, %v979
  %v1004 = vpack.c.b16 %v982, %v981
  %v1005 = vpack.c.b16 %v984, %v983
  %v1006 = vpack.c.b16 %v986, %v985
  %v1007 = vpack.c.b16 %v988, %v987
  %v1008 = vpack.c.b16 %v990, %v989
  %v1009 = vpack.c.b16 %v992, %v991
  %v1010 = vpack.c.b16 %v994, %v993
  %1027 = vmatpush.bf16.msra.mxu0 %v1002
  %1028 = vmatpush.bf16.msra.mxu0 %v1001
  %1029 = vmatpush.bf16.msra.mxu0 %v1000
  %1030 = vmatpush.bf16.msra.mxu0 %v999
  %1031 = vmatpush.bf16.msra.mxu0 %v998
  %1032 = vmatpush.bf16.msra.mxu0 %v997
  %1033 = vmatpush.bf16.msra.mxu0 %v996
  %1034 = vmatpush.bf16.msra.mxu0 %v995
  %1035 = vmatmul.bf16.gmra.mxu0 %v482
  %v1036 = vpop.f32.mrf.mxu0
  %v1037 = vadd.f32 %v928, %v1036
  %v1038 = vpop.f32.mrf.mxu0
  %1039 = vdwg.mxu0
  %1040 = vmatpush.bf16.msra.mxu0 %v1010
  %1041 = vmatpush.bf16.msra.mxu0 %v1009
  %1042 = vmatpush.bf16.msra.mxu0 %v1008
  %1043 = vmatpush.bf16.msra.mxu0 %v1007
  %1044 = vmatpush.bf16.msra.mxu0 %v1006
  %1045 = vmatpush.bf16.msra.mxu0 %v1005
  %1046 = vmatpush.bf16.msra.mxu0 %v1004
  %1047 = vmatpush.bf16.msra.mxu0 %v1003
  %1048 = vmatmul.bf16.gmra.mxu0 %v483
  %v1049 = vpop.f32.mrf.mxu0
  %v1050 = vadd.f32 %v1037, %v1049
  %v1051 = vpop.f32.mrf.mxu0
  %1052 = vdwg.mxu0
  %v1053 = vld [vmem:[%s11] sm:$0x1]
  %v1055 = vperm.slane %v1053, 0
  %v1057 = vadd.f32 %v1050, %v1055
  %vm1058 = vcmask 15360
  %1059 = vst.msk [vmem:[%s12] sm:$0xff] %vm1058, %v1057
  // Predicated region
  $region50: #{twinned_q_forward.1} parent=0 // pred_check
    _
  $region51: #{twinned_q_forward.1} parent=0 // pred_check_branch
    %1061 = sbr.rel (0) target = $region53
  $region52: #{twinned_q_forward.1} parent=0 // pred_region
    _
  $region53: #{twinned_q_forward.1} parent=0 // pred_fallthru
    _
  // Predicated region
  $region54: #{twinned_q_forward.1} parent=0 // pred_check
    _
  $region55: #{twinned_q_forward.1} parent=0 // pred_check_branch
    %1063 = sbr.rel (0) target = $region57
  $region56: #{twinned_q_forward.1} parent=0 // pred_region
    _
  $region57: #{twinned_q_forward.1} parent=0 // pred_fallthru
    _

</llo_original>
